<compile_context>
chip_gen: v7x
topology: tpu7x:2x2x1
jax: 0.10.0
libtpu: 0.0.40
codegen_flags: <defaults>
</compile_context>

<pallas_src>
import functools

import jax
import jax.numpy as jnp
from jax.experimental import pallas as pl
from jax.experimental.pallas import tpu as pltpu

_EPS = 1e-5


def mlp_kernel(x_ref, w1_ref, b1_ref, g_ref, bt_ref, w2_ref, b2_ref,
               o_ref, acc_ref, *, batch, inv_batch):
    h_idx = pl.program_id(1)

    # Fold the output bias into the accumulator init (saves the finalize add).
    @pl.when(h_idx == 0)
    def _():
        acc_ref[...] = jnp.broadcast_to(b2_ref[...], acc_ref.shape)

    # ---- Linear 1 on this H tile: (Bp, Dp) @ (Dp, TH) + (1, TH) ----
    x = x_ref[...]
    hid = jnp.dot(x, w1_ref[...], preferred_element_type=jnp.float32) + b1_ref[...]

    # ---- BatchNorm1d: fused sum / sum-of-squares over the *valid* batch rows ----
    if batch != hid.shape[0]:
        row = jax.lax.broadcasted_iota(jnp.int32, hid.shape, 0)
        hm = jnp.where(row < batch, hid, 0.0)
    else:
        hm = hid
    s = jnp.sum(hm, axis=0, keepdims=True)
    ss = jnp.sum(hm * hm, axis=0, keepdims=True)
    mean = s * inv_batch
    var = jnp.maximum(ss * inv_batch - mean * mean, 0.0)   # biased variance
    # Fold gamma * rsqrt(var+eps) and beta - mean*scale into one scale/shift pair.
    scale = g_ref[...] * jax.lax.rsqrt(var + _EPS)
    shift = bt_ref[...] - mean * scale
    hid = jnp.maximum(hid * scale + shift, 0.0)             # BN affine + ReLU

    # ---- Linear 2: accumulate the H-tile contribution into the f32 scratch ----
    acc_ref[...] += jnp.dot(hid.astype(w2_ref.dtype), w2_ref[...],
                            preferred_element_type=jnp.float32)

    @pl.when(h_idx == pl.num_programs(1) - 1)
    def _():
        o_ref[...] = acc_ref[...].astype(o_ref.dtype)


def _round_up(x, m):
    return (x + m - 1) // m * m


def _pick_tile(padded, candidates):
    for c in candidates:
        if padded % c == 0:
            return c
    return padded


def _pad2(a, rows, cols):
    if a.shape == (rows, cols):
        return a
    return jnp.pad(a, ((0, rows - a.shape[0]), (0, cols - a.shape[1])))


def mlp_forward(x, w1, b1, gamma, beta, w2, b2):
    """x: (B, D); w1: (H, D) PyTorch layout; w2: (O, H) PyTorch layout."""
    B, D = x.shape
    H = w1.shape[0]
    O = w2.shape[0]

    # ---- padding to hardware-friendly shapes (lane-dense output included) ----
    Bp = _round_up(B, 8)
    Dp = _round_up(D, 128)
    Hp = _round_up(H, 128)
    Op = _round_up(O, 128)
    TH = _pick_tile(Hp, candidates=(512, 384, 256, 128))
    # Wide output tiles minimize how often layer-1 + BN is recomputed.
    TN = _pick_tile(Op, candidates=(512, 384, 256, 128))

    f32 = jnp.float32
    x_p = _pad2(x.astype(f32), Bp, Dp)
    w1_p = _pad2(jnp.transpose(w1).astype(f32), Dp, Hp)      # (D, H) -> padded
    w2_p = _pad2(jnp.transpose(w2).astype(f32), Hp, Op)      # (H, O) -> padded
    b1_p = _pad2(b1.astype(f32).reshape(1, H), 1, Hp)
    g_p = _pad2(gamma.astype(f32).reshape(1, H), 1, Hp)      # padded cols stay 0
    bt_p = _pad2(beta.astype(f32).reshape(1, H), 1, Hp)
    b2_p = _pad2(b2.astype(f32).reshape(1, O), 1, Op)

    grid = (Op // TN, Hp // TH)   # (output tiles: parallel, H tiles: reduction)

    # explicit VMEM budget: resident x + double-buffered blocks + accumulator.
    blk_elems = (Bp * Dp                                   # x (resident)
                 + 2 * (Dp * TH + 3 * TH + TH * TN + TN)   # double-buffered tiles
                 + 2 * Bp * TN                             # out block + acc
                 + Bp * TN)                                # headroom
    vmem_limit = min(max(blk_elems * 4 * 2, 16 * 1024 * 1024), 48 * 1024 * 1024)

    kernel = functools.partial(mlp_kernel, batch=B, inv_batch=1.0 / B)

    out_p = pl.pallas_call(
        kernel,
        out_shape=jax.ShapeDtypeStruct((Bp, Op), jnp.float32),
        grid_spec=pltpu.PrefetchScalarGridSpec(
            num_scalar_prefetch=0,
            grid=grid,
            in_specs=[
                pl.BlockSpec((Bp, Dp), lambda n, h: (0, 0)),   # x (resident)
                pl.BlockSpec((Dp, TH), lambda n, h: (0, h)),   # w1 tile
                pl.BlockSpec((1, TH), lambda n, h: (0, h)),    # b1 tile
                pl.BlockSpec((1, TH), lambda n, h: (0, h)),    # gamma tile
                pl.BlockSpec((1, TH), lambda n, h: (0, h)),    # beta tile
                pl.BlockSpec((TH, TN), lambda n, h: (h, n)),   # w2 tile
                pl.BlockSpec((1, TN), lambda n, h: (0, n)),    # b2 tile
            ],
            out_specs=pl.BlockSpec((Bp, TN), lambda n, h: (0, n)),
            scratch_shapes=[pltpu.VMEM((Bp, TN), jnp.float32)],
        ),
        compiler_params=pltpu.CompilerParams(
            dimension_semantics=("parallel", "arbitrary"),
            vmem_limit_bytes=vmem_limit,
        ),
    )(x_p, w1_p, b1_p, g_p, bt_p, w2_p, b2_p)

    return out_p[:B, :O]


def reference_forward(x, w1, b1, gamma, beta, w2, b2):
    """Pure-JAX reference (matches PyTorch train-mode forward)."""
    h = x @ w1.T + b1
    mean = jnp.mean(h, axis=0, keepdims=True)
    var = jnp.mean((h - mean) ** 2, axis=0, keepdims=True)
    h = (h - mean) / jnp.sqrt(var + _EPS)
    h = h * gamma + beta
    h = jnp.maximum(h, 0.0)
    return h @ w2.T + b2


if __name__ == "__main__":
    # Small shapes consistent with an MLP over flat feature vectors.
    # batch=6 deliberately exercises the batch-padding / masked-stats path.
    batch, input_dim, hidden_dim, output_dim = 6, 16, 32, 8

    key = jax.random.PRNGKey(0)
    kx, kw1, kb1, kw2, kb2 = jax.random.split(key, 5)

    x = jax.random.normal(kx, (batch, input_dim), dtype=jnp.float32)

    # PyTorch-Linear-style uniform init (U[-1/sqrt(fan_in), +]).
    lim1 = 1.0 / jnp.sqrt(input_dim)
    w1 = jax.random.uniform(kw1, (hidden_dim, input_dim), jnp.float32, -lim1, lim1)
    b1 = jax.random.uniform(kb1, (hidden_dim,), jnp.float32, -lim1, lim1)

    lim2 = 1.0 / jnp.sqrt(hidden_dim)
    w2 = jax.random.uniform(kw2, (output_dim, hidden_dim), jnp.float32, -lim2, lim2)
    b2 = jax.random.uniform(kb2, (output_dim,), jnp.float32, -lim2, lim2)

    # BatchNorm1d affine params: default init gamma=1, beta=0.
    gamma = jnp.ones((hidden_dim,), jnp.float32)
    beta = jnp.zeros((hidden_dim,), jnp.float32)

    out = mlp_forward(x, w1, b1, gamma, beta, w2, b2)
    out = jax.block_until_ready(out)

    ref = reference_forward(x, w1, b1, gamma, beta, w2, b2)
    assert out.shape == (batch, output_dim)
    assert jnp.allclose(out, ref, atol=2e-4, rtol=2e-4), "mismatch vs reference"

    print("KERNEL_OK")
</pallas_src>

<mosaic_0001>
module attributes {stable_mosaic.version = 11 : i64} {
  func.func @mlp_kernel(%arg0: i32, %arg1: i32, %arg2: memref<8x128xf32, #tpu.memory_space<vmem>>, %arg3: memref<128x128xf32, #tpu.memory_space<vmem>>, %arg4: memref<1x128xf32, #tpu.memory_space<vmem>>, %arg5: memref<1x128xf32, #tpu.memory_space<vmem>>, %arg6: memref<1x128xf32, #tpu.memory_space<vmem>>, %arg7: memref<128x128xf32, #tpu.memory_space<vmem>>, %arg8: memref<1x128xf32, #tpu.memory_space<vmem>>, %arg9: memref<8x128xf32, #tpu.memory_space<vmem>>, %arg10: memref<8x128xf32, #tpu.memory_space<vmem>>) attributes {dimension_semantics = [#tpu.dimension_semantics<parallel>, #tpu.dimension_semantics<arbitrary>], iteration_bounds = array<i64: 1, 1>, scalar_prefetch = 0 : i64, scratch_operands = 1 : i64, tpu.core_type = #tpu.core_type<tc>, window_params = [{pipeline_mode = #tpu.pipeline_mode<synchronous>, transform_indices = @transform_0, window_bounds = array<i64: 8, 128>}, {transform_indices = @transform_1, window_bounds = array<i64: 128, 128>}, {transform_indices = @transform_2, window_bounds = array<i64: 1, 128>}, {transform_indices = @transform_3, window_bounds = array<i64: 1, 128>}, {transform_indices = @transform_4, window_bounds = array<i64: 1, 128>}, {transform_indices = @transform_5, window_bounds = array<i64: 128, 128>}, {transform_indices = @transform_6, window_bounds = array<i64: 1, 128>}, {transform_indices = @transform_7, window_bounds = array<i64: 8, 128>}]} {
    %c0_i32 = arith.constant 0 : i32
    %0 = arith.cmpi eq, %arg1, %c0_i32 : i32
    %1 = arith.extui %0 : i1 to i32
    %c0_i32_0 = arith.constant 0 : i32
    %2 = arith.cmpi ne, %1, %c0_i32_0 : i32
    scf.if %2 {
      %c0_27 = arith.constant 0 : index
      %c0_28 = arith.constant 0 : index
      %49 = vector.load %arg8[%c0_27, %c0_28] : memref<1x128xf32, #tpu.memory_space<vmem>>, vector<1x128xf32>
      %50 = vector.shape_cast %49 : vector<1x128xf32> to vector<1x128xf32>
      %51 = vector.broadcast %50 : vector<1x128xf32> to vector<8x128xf32>
      %c0_29 = arith.constant 0 : index
      %c0_30 = arith.constant 0 : index
      %52 = vector.load %arg10[%c0_29, %c0_30] : memref<8x128xf32, #tpu.memory_space<vmem>>, vector<8x128xf32>
      tpu.vector_store %arg10[%c0_29, %c0_30], %51 {strides = array<i32>} : memref<8x128xf32, #tpu.memory_space<vmem>>, vector<8x128xf32>,
    } else {
    }
    %c0 = arith.constant 0 : index
    %c0_1 = arith.constant 0 : index
    %3 = vector.load %arg2[%c0, %c0_1] : memref<8x128xf32, #tpu.memory_space<vmem>>, vector<8x128xf32>
    %c0_2 = arith.constant 0 : index
    %c0_3 = arith.constant 0 : index
    %4 = vector.load %arg3[%c0_2, %c0_3] : memref<128x128xf32, #tpu.memory_space<vmem>>, vector<128x128xf32>
    %cst = arith.constant dense<0.000000e+00> : vector<8x128xf32>
    %5 = tpu.matmul %3, %4, %cst {dimension_numbers = #tpu.dot_dimension_numbers<[1], [0], [0], [1], [0, 0, 1, 1], [], []>} : vector<8x128xf32>, vector<128x128xf32>, vector<8x128xf32> -> vector<8x128xf32>
    %c0_4 = arith.constant 0 : index
    %c0_5 = arith.constant 0 : index
    %6 = vector.load %arg4[%c0_4, %c0_5] : memref<1x128xf32, #tpu.memory_space<vmem>>, vector<1x128xf32>
    %7 = vector.broadcast %6 : vector<1x128xf32> to vector<8x128xf32>
    %8 = arith.addf %5, %7 : vector<8x128xf32>
    %9 = tpu.iota {dimensions = array<i32: 0>} : vector<8x128xi32>
    %c6_i32 = arith.constant 6 : i32
    %10 = vector.broadcast %c6_i32 : i32 to vector<8x128xi32>
    %11 = arith.cmpi slt, %9, %10 : vector<8x128xi32>
    %cst_6 = arith.constant 0.000000e+00 : f32
    %12 = vector.broadcast %cst_6 : f32 to vector<8x128xf32>
    %13 = arith.select %11, %8, %12 : vector<8x128xi1>, vector<8x128xf32>
    %cst_7 = arith.constant dense<0.000000e+00> : vector<128xf32>
    %14 = vector.multi_reduction <add>, %13, %cst_7 [0] : vector<8x128xf32> to vector<128xf32>
    %15 = vector.shape_cast %14 : vector<128xf32> to vector<1x128xf32>
    %16 = arith.mulf %13, %13 : vector<8x128xf32>
    %cst_8 = arith.constant dense<0.000000e+00> : vector<128xf32>
    %17 = vector.multi_reduction <add>, %16, %cst_8 [0] : vector<8x128xf32> to vector<128xf32>
    %18 = vector.shape_cast %17 : vector<128xf32> to vector<1x128xf32>
    %cst_9 = arith.constant 0.166666672 : f32
    %19 = vector.broadcast %cst_9 : f32 to vector<1x128xf32>
    %20 = arith.mulf %15, %19 : vector<1x128xf32>
    %cst_10 = arith.constant 0.166666672 : f32
    %21 = vector.broadcast %cst_10 : f32 to vector<1x128xf32>
    %22 = arith.mulf %18, %21 : vector<1x128xf32>
    %23 = arith.mulf %20, %20 : vector<1x128xf32>
    %24 = arith.subf %22, %23 : vector<1x128xf32>
    %cst_11 = arith.constant 0.000000e+00 : f32
    %25 = vector.broadcast %cst_11 : f32 to vector<1x128xf32>
    %26 = arith.maximumf %24, %25 : vector<1x128xf32>
    %c0_12 = arith.constant 0 : index
    %c0_13 = arith.constant 0 : index
    %27 = vector.load %arg5[%c0_12, %c0_13] : memref<1x128xf32, #tpu.memory_space<vmem>>, vector<1x128xf32>
    %cst_14 = arith.constant 9.99999974E-6 : f32
    %28 = vector.broadcast %cst_14 : f32 to vector<1x128xf32>
    %29 = arith.addf %26, %28 : vector<1x128xf32>
    %30 = math.rsqrt %29 : vector<1x128xf32>
    %31 = arith.mulf %27, %30 : vector<1x128xf32>
    %c0_15 = arith.constant 0 : index
    %c0_16 = arith.constant 0 : index
    %32 = vector.load %arg6[%c0_15, %c0_16] : memref<1x128xf32, #tpu.memory_space<vmem>>, vector<1x128xf32>
    %33 = arith.mulf %20, %31 : vector<1x128xf32>
    %34 = arith.subf %32, %33 : vector<1x128xf32>
    %35 = vector.broadcast %31 : vector<1x128xf32> to vector<8x128xf32>
    %36 = arith.mulf %8, %35 : vector<8x128xf32>
    %37 = vector.broadcast %34 : vector<1x128xf32> to vector<8x128xf32>
    %38 = arith.addf %36, %37 : vector<8x128xf32>
    %cst_17 = arith.constant 0.000000e+00 : f32
    %39 = vector.broadcast %cst_17 : f32 to vector<8x128xf32>
    %40 = arith.maximumf %38, %39 : vector<8x128xf32>
    %c0_18 = arith.constant 0 : index
    %c0_19 = arith.constant 0 : index
    %41 = vector.load %arg10[%c0_18, %c0_19] : memref<8x128xf32, #tpu.memory_space<vmem>>, vector<8x128xf32>
    %c0_20 = arith.constant 0 : index
    %c0_21 = arith.constant 0 : index
    %42 = vector.load %arg7[%c0_20, %c0_21] : memref<128x128xf32, #tpu.memory_space<vmem>>, vector<128x128xf32>
    %cst_22 = arith.constant dense<0.000000e+00> : vector<8x128xf32>
    %43 = tpu.matmul %40, %42, %cst_22 {dimension_numbers = #tpu.dot_dimension_numbers<[1], [0], [0], [1], [0, 0, 1, 1], [], []>} : vector<8x128xf32>, vector<128x128xf32>, vector<8x128xf32> -> vector<8x128xf32>
    %44 = arith.addf %41, %43 : vector<8x128xf32>
    %c0_23 = arith.constant 0 : index
    %c0_24 = arith.constant 0 : index
    %45 = vector.load %arg10[%c0_23, %c0_24] : memref<8x128xf32, #tpu.memory_space<vmem>>, vector<8x128xf32>
    tpu.vector_store %arg10[%c0_23, %c0_24], %44 {strides = array<i32>} : memref<8x128xf32, #tpu.memory_space<vmem>>, vector<8x128xf32>,
    %c0_i32_25 = arith.constant 0 : i32
    %46 = arith.cmpi eq, %arg1, %c0_i32_25 : i32
    %47 = arith.extui %46 : i1 to i32
    %c0_i32_26 = arith.constant 0 : i32
    %48 = arith.cmpi ne, %47, %c0_i32_26 : i32
    scf.if %48 {
      %c0_27 = arith.constant 0 : index
      %c0_28 = arith.constant 0 : index
      %49 = vector.load %arg10[%c0_27, %c0_28] : memref<8x128xf32, #tpu.memory_space<vmem>>, vector<8x128xf32>
      %c0_29 = arith.constant 0 : index
      %c0_30 = arith.constant 0 : index
      %50 = vector.load %arg9[%c0_29, %c0_30] : memref<8x128xf32, #tpu.memory_space<vmem>>, vector<8x128xf32>
      tpu.vector_store %arg9[%c0_29, %c0_30], %49 {strides = array<i32>} : memref<8x128xf32, #tpu.memory_space<vmem>>, vector<8x128xf32>,
    } else {
    }
    return
  }
  func.func @transform_0(%arg0: i32, %arg1: i32) -> (i32, i32) {
    %c0_i32 = arith.constant 0 : i32
    %c0_i32_0 = arith.constant 0 : i32
    %c0_i32_1 = arith.constant 0 : i32
    return %c0_i32, %c0_i32_0 : i32, i32
  }
  func.func @transform_1(%arg0: i32, %arg1: i32) -> (i32, i32) {
    %c0_i32 = arith.constant 0 : i32
    %c0_i32_0 = arith.constant 0 : i32
    return %c0_i32, %arg1 : i32, i32
  }
  func.func @transform_2(%arg0: i32, %arg1: i32) -> (i32, i32) {
    %c0_i32 = arith.constant 0 : i32
    %c0_i32_0 = arith.constant 0 : i32
    return %c0_i32, %arg1 : i32, i32
  }
  func.func @transform_3(%arg0: i32, %arg1: i32) -> (i32, i32) {
    %c0_i32 = arith.constant 0 : i32
    %c0_i32_0 = arith.constant 0 : i32
    return %c0_i32, %arg1 : i32, i32
  }
  func.func @transform_4(%arg0: i32, %arg1: i32) -> (i32, i32) {
    %c0_i32 = arith.constant 0 : i32
    %c0_i32_0 = arith.constant 0 : i32
    return %c0_i32, %arg1 : i32, i32
  }
  func.func @transform_5(%arg0: i32, %arg1: i32) -> (i32, i32) {
    %c0_i32 = arith.constant 0 : i32
    return %arg1, %arg0 : i32, i32
  }
  func.func @transform_6(%arg0: i32, %arg1: i32) -> (i32, i32) {
    %c0_i32 = arith.constant 0 : i32
    %c0_i32_0 = arith.constant 0 : i32
    return %c0_i32, %arg0 : i32, i32
  }
  func.func @transform_7(%arg0: i32, %arg1: i32) -> (i32, i32) {
    %c0_i32 = arith.constant 0 : i32
    %c0_i32_0 = arith.constant 0 : i32
    return %c0_i32, %arg0 : i32, i32
  }
}

</mosaic_0001>

<llo_original>
// kernel: tpu_custom_call.1
$region0: #{tpu_custom_call.1}
  #allocation0 [shape = 'u32[]', space=smem, size = 0x4, offset = 0x4, fixed_abs, tag = 'smem constant byte address 0x4 - core index']
  #allocation1 [shape = 'u32[144,128]{1,0:T(1,128)}', space=vmem, size = 0x12000, scoped, tag = 'internal scratch']
  #allocation2 [shape = 'f32[8,128]{1,0:T(8,128)}', space=vmem, size = 0x1000, scoped, tag = 'scratch operand']
  %s0 = inlined_call_operand.hbm [shape: f32[8,128], index: 0, kind: input, shape index: {}]
  %s1 = inlined_call_operand.hbm [shape: f32[128,128], index: 1, kind: input, shape index: {}]
  %s2 = inlined_call_operand.vmem [shape: f32[1,128], index: 2, kind: input, shape index: {}]
  %s3 = inlined_call_operand.vmem [shape: f32[1,128], index: 3, kind: input, shape index: {}]
  %s4 = inlined_call_operand.vmem [shape: f32[1,128], index: 4, kind: input, shape index: {}]
  %s5 = inlined_call_operand.hbm [shape: f32[128,128], index: 5, kind: input, shape index: {}]
  %s6 = inlined_call_operand.vmem [shape: f32[1,128], index: 6, kind: input, shape index: {}]
  %s7 = inlined_call_operand.hbm [shape: f32[8,128], index: 7, kind: output, shape index: {}]
  %s8 = sld [smem:[#allocation0]]
  $region58: #{tpu_custom_call.1} parent=0
    _
  %s10 = ssub.s32 1, %s8
  %s11 = scalar_select 0, %s10, %s8
  $region1: #{tpu_custom_call.1} parent=0
    #allocation3 [shape = 'u8[4096]{0}', space=vmem, size = 0x1000, scoped, tag = 'input window, operand 0, single buffered']
    #allocation4 [shape = 's32[1]{0}', space=sflag, size = 0x4, scoped, tag = 'scoped memory for tpu_custom_call.1']
    #allocation5 [shape = 's32[1]{0}', space=sflag, size = 0x4, scoped, tag = 'scoped memory for tpu_custom_call.1']
    #allocation6 [shape = 'u8[65536]{0}', space=vmem, size = 0x10000, scoped, tag = 'input window, operand 1, single buffered']
    #allocation7 [shape = 's32[1]{0}', space=sflag, size = 0x4, scoped, tag = 'scoped memory for tpu_custom_call.1']
    #allocation8 [shape = 'u8[65536]{0}', space=vmem, size = 0x10000, scoped, tag = 'input window, operand 5, single buffered']
    #allocation9 [shape = 'u8[4096]{0}', space=vmem, size = 0x1000, scoped, tag = 'output window, operand 0, single buffered']
    %12 = vsyncpa [#allocation4], 0
    %13 = vsyncpa [#allocation7], 0
    %14 = vsyncpa [#allocation5], 0
    // Predicated region
    $region2: #{tpu_custom_call.1} parent=1 // pred_check
      _
    $region3: #{tpu_custom_call.1} parent=1 // pred_check_branch
      %16 = sbr.rel (0) target = $region5
    $region4: #{tpu_custom_call.1} parent=1 // pred_region
      %s18 = ssub.s32 128, 128
      %19 = vsyncadd [#allocation4], %s18
      %s21 = sshll.u32 [#allocation3], 4
      %s22 = int_to_ptr.vmem [resolvable:$true] %s21
      %24 = dma.hbm_to_vmem [thread:$0]  %s0, 128, %s22, [#allocation4]
    $region5: #{tpu_custom_call.1} parent=1 // pred_fallthru
      _
    // Predicated region
    $region6: #{tpu_custom_call.1} parent=1 // pred_check
      _
    $region7: #{tpu_custom_call.1} parent=1 // pred_check_branch
      %26 = sbr.rel (0) target = $region9
    $region8: #{tpu_custom_call.1} parent=1 // pred_region
      %s28 = ssub.s32 2048, 2048
      %29 = vsyncadd [#allocation7], %s28
      %s30 = sshll.u32 [#allocation6], 4
      %s31 = int_to_ptr.vmem [resolvable:$true] %s30
      %36 = dma.hbm_to_vmem [thread:$0]  %s1, 2048, %s31, [#allocation7], 128, 128, 8
    $region9: #{tpu_custom_call.1} parent=1 // pred_fallthru
      _
    // Predicated region
    $region10: #{tpu_custom_call.1} parent=1 // pred_check
      _
    $region11: #{tpu_custom_call.1} parent=1 // pred_check_branch
      %38 = sbr.rel (0) target = $region13
    $region12: #{tpu_custom_call.1} parent=1 // pred_region
      _
    $region13: #{tpu_custom_call.1} parent=1 // pred_fallthru
      _
    // Predicated region
    $region14: #{tpu_custom_call.1} parent=1 // pred_check
      _
    $region15: #{tpu_custom_call.1} parent=1 // pred_check_branch
      %40 = sbr.rel (0) target = $region17
    $region16: #{tpu_custom_call.1} parent=1 // pred_region
      _
    $region17: #{tpu_custom_call.1} parent=1 // pred_fallthru
      _
    // Predicated region
    $region18: #{tpu_custom_call.1} parent=1 // pred_check
      _
    $region19: #{tpu_custom_call.1} parent=1 // pred_check_branch
      %42 = sbr.rel (0) target = $region21
    $region20: #{tpu_custom_call.1} parent=1 // pred_region
      _
    $region21: #{tpu_custom_call.1} parent=1 // pred_fallthru
      _
    // Predicated region
    $region22: #{tpu_custom_call.1} parent=1 // pred_check
      _
    $region23: #{tpu_custom_call.1} parent=1 // pred_check_branch
      %44 = sbr.rel (0) target = $region25
    $region24: #{tpu_custom_call.1} parent=1 // pred_region
      %s46 = ssub.s32 2048, 2048
      %47 = vsyncadd [#allocation7], %s46
      %s48 = sshll.u32 [#allocation8], 4
      %s49 = int_to_ptr.vmem [resolvable:$true] %s48
      %54 = dma.hbm_to_vmem [thread:$0]  %s5, 2048, %s49, [#allocation7], 128, 128, 8
    $region25: #{tpu_custom_call.1} parent=1 // pred_fallthru
      _
    // Predicated region
    $region26: #{tpu_custom_call.1} parent=1 // pred_check
      _
    $region27: #{tpu_custom_call.1} parent=1 // pred_check_branch
      %56 = sbr.rel (0) target = $region29
    $region28: #{tpu_custom_call.1} parent=1 // pred_region
      _
    $region29: #{tpu_custom_call.1} parent=1 // pred_fallthru
      _
    // Predicated region
    $region30: #{tpu_custom_call.1} parent=1 // pred_check
      _
    $region31: #{tpu_custom_call.1} parent=1 // pred_check_branch
      %58 = sbr.rel (0) target = $region33
    $region32: #{tpu_custom_call.1} parent=1 // pred_region
      %59 = dma.done [#allocation4], 128
    $region33: #{tpu_custom_call.1} parent=1 // pred_fallthru
      _
    // Predicated region
    $region34: #{tpu_custom_call.1} parent=1 // pred_check
      _
    $region35: #{tpu_custom_call.1} parent=1 // pred_check_branch
      %61 = sbr.rel (0) target = $region37
    $region36: #{tpu_custom_call.1} parent=1 // pred_region
      %62 = dma.done [#allocation7], 2048
    $region37: #{tpu_custom_call.1} parent=1 // pred_fallthru
      _
    // Predicated region
    $region38: #{tpu_custom_call.1} parent=1 // pred_check
      _
    $region39: #{tpu_custom_call.1} parent=1 // pred_check_branch
      %64 = sbr.rel (0) target = $region41
    $region40: #{tpu_custom_call.1} parent=1 // pred_region
      %65 = dma.done [#allocation7], 2048
    $region41: #{tpu_custom_call.1} parent=1 // pred_fallthru
      _
    %p66 = scmp.eq.s32.totalorder 0, 0
    // Predicated region
    $region42: #{tpu_custom_call.1} parent=1 // pred_check
      %p67 = pneg %p66
    $region43: #{tpu_custom_call.1} parent=1 // pred_check_branch
      %69 = sbr.rel (%p67) target = $region45
    $region44: #{tpu_custom_call.1} parent=1 // pred_region
      %v70 = vld [vmem:[%s6] sm:$0x1]
      %v72 = vlaneseq
      %v73 = vshrl.u32 %v72, 7
      %v74 = vsub.s32 0, %v73
      %v75 = vrot.slane %v70, %v74
      %77 = vst [vmem:[#allocation2] sm:$0xff] %v75
    $region45: #{tpu_custom_call.1} parent=1 // pred_fallthru
      _
    %v78 = vld [vmem:[#allocation3] sm:$0xff]
    %v79 = vld [vmem:[#allocation6] sm:$0xff]
    %v80 = vld [vmem:[#allocation6 + $0x8] sm:$0xff]
    %v81 = vld [vmem:[#allocation6 + $0x10] sm:$0xff]
    %v82 = vld [vmem:[#allocation6 + $0x18] sm:$0xff]
    %v83 = vld [vmem:[#allocation6 + $0x20] sm:$0xff]
    %v84 = vld [vmem:[#allocation6 + $0x28] sm:$0xff]
    %v85 = vld [vmem:[#allocation6 + $0x30] sm:$0xff]
    %v86 = vld [vmem:[#allocation6 + $0x38] sm:$0xff]
    %v87 = vld [vmem:[#allocation6 + $0x40] sm:$0xff]
    %v88 = vld [vmem:[#allocation6 + $0x48] sm:$0xff]
    %v89 = vld [vmem:[#allocation6 + $0x50] sm:$0xff]
    %v90 = vld [vmem:[#allocation6 + $0x58] sm:$0xff]
    %v91 = vld [vmem:[#allocation6 + $0x60] sm:$0xff]
    %v92 = vld [vmem:[#allocation6 + $0x68] sm:$0xff]
    %v93 = vld [vmem:[#allocation6 + $0x70] sm:$0xff]
    %v94 = vld [vmem:[#allocation6 + $0x78] sm:$0xff]
    %v95 = vld [vmem:[%s2] sm:$0x1]
    %v97 = vlaneseq
    %v98 = vshrl.u32 %v97, 7
    %v99 = vsub.s32 0, %v98
    %v100 = vrot.slane %v95, %v99
    %102 = vmatprep.subr.mxu0 0.0
    %103 = vmatpush1.msra.mxu0 %v79
    %104 = vmatprep.subr.mxu0 0.0
    %105 = vmatpush1.msra.mxu0 %v80
    %106 = vmatprep.subr.mxu0 0.0
    %107 = vmatpush1.msra.mxu0 %v81
    %108 = vmatprep.subr.mxu0 0.0
    %109 = vmatpush1.msra.mxu0 %v82
    %110 = vmatprep.subr.mxu0 0.0
    %111 = vmatpush1.msra.mxu0 %v83
    %112 = vmatprep.subr.mxu0 0.0
    %113 = vmatpush1.msra.mxu0 %v84
    %114 = vmatprep.subr.mxu0 0.0
    %115 = vmatpush1.msra.mxu0 %v85
    %116 = vmatprep.subr.mxu0 0.0
    %117 = vmatpush1.msra.mxu0 %v86
    %118 = vmatprep.subr.mxu0 0.0
    %119 = vmatpush1.msra.mxu0 %v87
    %120 = vmatprep.subr.mxu0 0.0
    %121 = vmatpush1.msra.mxu0 %v88
    %122 = vmatprep.subr.mxu0 0.0
    %123 = vmatpush1.msra.mxu0 %v89
    %124 = vmatprep.subr.mxu0 0.0
    %125 = vmatpush1.msra.mxu0 %v90
    %126 = vmatprep.subr.mxu0 0.0
    %127 = vmatpush1.msra.mxu0 %v91
    %128 = vmatprep.subr.mxu0 0.0
    %129 = vmatpush1.msra.mxu0 %v92
    %130 = vmatprep.subr.mxu0 0.0
    %131 = vmatpush1.msra.mxu0 %v93
    %132 = vmatprep.subr.mxu0 0.0
    %133 = vmatpush1.msra.mxu0 %v94
    %134 = vmatprep.subr.mxu0 0.0
    %135 = vmatpush1.msra.mxu0 0.0
    %136 = vmatprep.subr.mxu0 0.0
    %137 = vmatpush1.msra.mxu0 0.0
    %138 = vmatprep.subr.mxu0 0.0
    %139 = vmatpush1.msra.mxu0 0.0
    %140 = vmatprep.subr.mxu0 0.0
    %141 = vmatpush1.msra.mxu0 0.0
    %142 = vmatprep.subr.mxu0 0.0
    %143 = vmatpush1.msra.mxu0 0.0
    %144 = vmatprep.subr.mxu0 0.0
    %145 = vmatpush1.msra.mxu0 0.0
    %146 = vmatprep.subr.mxu0 0.0
    %147 = vmatpush1.msra.mxu0 0.0
    %148 = vmatprep.subr.mxu0 0.0
    %149 = vmatpush1.msra.mxu0 0.0
    %150 = vmatprep.subr.mxu0 0.0
    %151 = vmatpush1.msra.mxu0 0.0
    %152 = vmatprep.subr.mxu0 0.0
    %153 = vmatpush1.msra.mxu0 0.0
    %154 = vmatprep.subr.mxu0 0.0
    %155 = vmatpush1.msra.mxu0 0.0
    %156 = vmatprep.subr.mxu0 0.0
    %157 = vmatpush1.msra.mxu0 0.0
    %158 = vmatprep.subr.mxu0 0.0
    %159 = vmatpush1.msra.mxu0 0.0
    %160 = vmatprep.subr.mxu0 0.0
    %161 = vmatpush1.msra.mxu0 0.0
    %162 = vmatprep.subr.mxu0 0.0
    %163 = vmatpush1.msra.mxu0 0.0
    %164 = vmatprep.subr.mxu0 0.0
    %165 = vmatpush1.msra.mxu0 0.0
    %166 = vmatprep.mubr.f32.mxu0 0.0
    %167 = vmatmul.mubr.f32.gmra.mrb[0].mxu0 %v78
    %v168 = vpop.f32.mrb[0].mxu0
    %v169 = vadd.f32 %v100, %v168
    %v170 = vpop.f32.mrb[0].mxu0
    %171 = vdwg.mxu0
    %v172 = vlaneseq
    %v173 = vshrl.u32 %v172, 7
    %vm174 = vcmp.lt.s32.totalorder %v173, 6
    %v175 = vsel %vm174, %v169, 0.0
    %v176 = vrot.slane %v175, 4
    %v177 = vadd.f32 %v175, %v176
    %v178 = vrot.slane %v177, 2
    %v179 = vadd.f32 %v177, %v178
    %v180 = vrot.slane %v179, 1
    %v181 = vadd.f32 %v179, %v180
    %v182 = vmul.f32 %v175, %v175
    %v183 = vrot.slane %v182, 4
    %v184 = vadd.f32 %v182, %v183
    %v185 = vrot.slane %v184, 2
    %v186 = vadd.f32 %v184, %v185
    %v187 = vrot.slane %v186, 1
    %v188 = vadd.f32 %v186, %v187
    %v189 = vmul.f32 %v181, 0.16666667
    %v190 = vmul.f32 %v188, 0.16666667
    %v191 = vmul.f32 %v189, %v189
    %v192 = vsub.f32 %v190, %v191
    %v193 = vmax.f32 %v192, 0.0
    %v194 = vld [vmem:[%s3] sm:$0x1]
    %v195 = vadd.f32 %v193, 1e-05
    %v196 = vrsqrt.pop %v195
    %v197 = vmul.f32 %v194, %v196
    %v198 = vld [vmem:[%s4] sm:$0x1]
    %v199 = vmul.f32 %v189, %v197
    %v200 = vsub.f32 %v198, %v199
    %v202 = vlaneseq
    %v203 = vshrl.u32 %v202, 7
    %v204 = vsub.s32 0, %v203
    %v205 = vrot.slane %v197, %v204
    %v207 = vmul.f32 %v169, %v205
    %v209 = vlaneseq
    %v210 = vshrl.u32 %v209, 7
    %v211 = vsub.s32 0, %v210
    %v212 = vrot.slane %v200, %v211
    %v214 = vadd.f32 %v207, %v212
    %v215 = vmax.f32 %v214, 0.0
    %v216 = vld [vmem:[#allocation2] sm:$0xff]
    %v217 = vld [vmem:[#allocation8] sm:$0xff]
    %v218 = vld [vmem:[#allocation8 + $0x8] sm:$0xff]
    %v219 = vld [vmem:[#allocation8 + $0x10] sm:$0xff]
    %v220 = vld [vmem:[#allocation8 + $0x18] sm:$0xff]
    %v221 = vld [vmem:[#allocation8 + $0x20] sm:$0xff]
    %v222 = vld [vmem:[#allocation8 + $0x28] sm:$0xff]
    %v223 = vld [vmem:[#allocation8 + $0x30] sm:$0xff]
    %v224 = vld [vmem:[#allocation8 + $0x38] sm:$0xff]
    %v225 = vld [vmem:[#allocation8 + $0x40] sm:$0xff]
    %v226 = vld [vmem:[#allocation8 + $0x48] sm:$0xff]
    %v227 = vld [vmem:[#allocation8 + $0x50] sm:$0xff]
    %v228 = vld [vmem:[#allocation8 + $0x58] sm:$0xff]
    %v229 = vld [vmem:[#allocation8 + $0x60] sm:$0xff]
    %v230 = vld [vmem:[#allocation8 + $0x68] sm:$0xff]
    %v231 = vld [vmem:[#allocation8 + $0x70] sm:$0xff]
    %v232 = vld [vmem:[#allocation8 + $0x78] sm:$0xff]
    %233 = vmatprep.subr.mxu0 0.0
    %234 = vmatpush1.msra.mxu0 %v217
    %235 = vmatprep.subr.mxu0 0.0
    %236 = vmatpush1.msra.mxu0 %v218
    %237 = vmatprep.subr.mxu0 0.0
    %238 = vmatpush1.msra.mxu0 %v219
    %239 = vmatprep.subr.mxu0 0.0
    %240 = vmatpush1.msra.mxu0 %v220
    %241 = vmatprep.subr.mxu0 0.0
    %242 = vmatpush1.msra.mxu0 %v221
    %243 = vmatprep.subr.mxu0 0.0
    %244 = vmatpush1.msra.mxu0 %v222
    %245 = vmatprep.subr.mxu0 0.0
    %246 = vmatpush1.msra.mxu0 %v223
    %247 = vmatprep.subr.mxu0 0.0
    %248 = vmatpush1.msra.mxu0 %v224
    %249 = vmatprep.subr.mxu0 0.0
    %250 = vmatpush1.msra.mxu0 %v225
    %251 = vmatprep.subr.mxu0 0.0
    %252 = vmatpush1.msra.mxu0 %v226
    %253 = vmatprep.subr.mxu0 0.0
    %254 = vmatpush1.msra.mxu0 %v227
    %255 = vmatprep.subr.mxu0 0.0
    %256 = vmatpush1.msra.mxu0 %v228
    %257 = vmatprep.subr.mxu0 0.0
    %258 = vmatpush1.msra.mxu0 %v229
    %259 = vmatprep.subr.mxu0 0.0
    %260 = vmatpush1.msra.mxu0 %v230
    %261 = vmatprep.subr.mxu0 0.0
    %262 = vmatpush1.msra.mxu0 %v231
    %263 = vmatprep.subr.mxu0 0.0
    %264 = vmatpush1.msra.mxu0 %v232
    %265 = vmatprep.subr.mxu0 0.0
    %266 = vmatpush1.msra.mxu0 0.0
    %267 = vmatprep.subr.mxu0 0.0
    %268 = vmatpush1.msra.mxu0 0.0
    %269 = vmatprep.subr.mxu0 0.0
    %270 = vmatpush1.msra.mxu0 0.0
    %271 = vmatprep.subr.mxu0 0.0
    %272 = vmatpush1.msra.mxu0 0.0
    %273 = vmatprep.subr.mxu0 0.0
    %274 = vmatpush1.msra.mxu0 0.0
    %275 = vmatprep.subr.mxu0 0.0
    %276 = vmatpush1.msra.mxu0 0.0
    %277 = vmatprep.subr.mxu0 0.0
    %278 = vmatpush1.msra.mxu0 0.0
    %279 = vmatprep.subr.mxu0 0.0
    %280 = vmatpush1.msra.mxu0 0.0
    %281 = vmatprep.subr.mxu0 0.0
    %282 = vmatpush1.msra.mxu0 0.0
    %283 = vmatprep.subr.mxu0 0.0
    %284 = vmatpush1.msra.mxu0 0.0
    %285 = vmatprep.subr.mxu0 0.0
    %286 = vmatpush1.msra.mxu0 0.0
    %287 = vmatprep.subr.mxu0 0.0
    %288 = vmatpush1.msra.mxu0 0.0
    %289 = vmatprep.subr.mxu0 0.0
    %290 = vmatpush1.msra.mxu0 0.0
    %291 = vmatprep.subr.mxu0 0.0
    %292 = vmatpush1.msra.mxu0 0.0
    %293 = vmatprep.subr.mxu0 0.0
    %294 = vmatpush1.msra.mxu0 0.0
    %295 = vmatprep.subr.mxu0 0.0
    %296 = vmatpush1.msra.mxu0 0.0
    %297 = vmatprep.mubr.f32.mxu0 0.0
    %298 = vmatmul.mubr.f32.gmra.mrb[0].mxu0 %v215
    %v299 = vpop.f32.mrb[0].mxu0
    %v300 = vadd.f32 0.0, %v299
    %v301 = vpop.f32.mrb[0].mxu0
    %302 = vdwg.mxu0
    %v303 = vadd.f32 %v216, %v300
    %304 = vst [vmem:[#allocation2] sm:$0xff] %v303
    // Predicated region
    $region46: #{tpu_custom_call.1} parent=1 // pred_check
      %p305 = pneg %p66
    $region47: #{tpu_custom_call.1} parent=1 // pred_check_branch
      %307 = sbr.rel (%p305) target = $region49
    $region48: #{tpu_custom_call.1} parent=1 // pred_region
      %v308 = vld [vmem:[#allocation2] sm:$0xff]
      %309 = vst [vmem:[#allocation9] sm:$0xff] %v308
    $region49: #{tpu_custom_call.1} parent=1 // pred_fallthru
      _
    // Predicated region
    $region50: #{tpu_custom_call.1} parent=1 // pred_check
      _
    $region51: #{tpu_custom_call.1} parent=1 // pred_check_branch
      %311 = sbr.rel (0) target = $region53
    $region52: #{tpu_custom_call.1} parent=1 // pred_region
      %s313 = ssub.s32 128, 128
      %314 = vsyncadd [#allocation5], %s313
      %s316 = sshll.u32 [#allocation9], 4
      %s317 = int_to_ptr.vmem [resolvable:$true] %s316
      %319 = dma.vmem_to_hbm [thread:$0]  %s317, 128, %s7, [#allocation5]
    $region53: #{tpu_custom_call.1} parent=1 // pred_fallthru
      _
    // Predicated region
    $region54: #{tpu_custom_call.1} parent=1 // pred_check
      _
    $region55: #{tpu_custom_call.1} parent=1 // pred_check_branch
      %321 = sbr.rel (0) target = $region57
    $region56: #{tpu_custom_call.1} parent=1 // pred_region
      %322 = dma.done [#allocation5], 128
    $region57: #{tpu_custom_call.1} parent=1 // pred_fallthru
      _
    %323 = vsyncpa [#allocation4], 1
    %324 = vsyncpa [#allocation7], 1
    %325 = vsyncpa [#allocation5], 1

</llo_original>
